<compile_context>
chip_gen: v5e
topology: v5e:2x2
jax: 0.10.0
libtpu: 0.0.40
codegen_flags: <defaults>
</compile_context>

<pallas_src>
import functools

import jax
import jax.numpy as jnp
from jax import lax
from jax.experimental import pallas as pl
from jax.experimental.pallas import tpu as pltpu


def _round_up(x, m):
    return (x + m - 1) // m * m


def _choose_rows_and_tile(total_rows, max_tile=512):
    """Pick (padded_rows, tile_rows).

    Tiles are multiples of 16 rows (bf16 packs 16 sublanes per vreg).  Small
    inputs use a single right-sized tile; medium inputs are split into two
    equal tiles so the 'parallel' row axis can be sharded across v7x's two
    TensorCores; large inputs use max_tile-row tiles (per-step overhead is
    ~0.35 us, so bigger tiles track the HBM roofline better).
    """
    r = _round_up(max(total_rows, 16), 16)
    if r <= 32:
        return r, r
    if r <= 2 * max_tile:
        r = _round_up(r, 32)
        return r, r // 2
    r = _round_up(r, max_tile)
    return r, max_tile


def _encode_kernel(x_ref, w_ref, b_ref, o_ref, *, n_nodes, tile_rows):
    # x_ref: (TN, K_pad) bf16   w_ref: (K_pad, H_pad) bf16
    # b_ref: (2, H_pad) f32 (row 0 = node bias, row 1 = edge bias)
    # o_ref: (TN, H_pad) bf16
    acc = jnp.dot(x_ref[...], w_ref[...], preferred_element_type=jnp.float32)

    # Per-row bias select: rows < n_nodes are node rows, the rest edge rows.
    # n_nodes is a trace-time Python int, so no scalar prefetch is needed.
    bias_tbl = b_ref[...]
    h_pad = bias_tbl.shape[1]
    row0 = pl.program_id(0) * tile_rows
    rows = row0 + lax.broadcasted_iota(jnp.int32, (tile_rows, h_pad), 0)
    bias = jnp.where(rows < n_nodes, bias_tbl[0:1, :], bias_tbl[1:2, :])

    # f32 epilogue (bias add + ReLU), cast to bf16 only on the store.
    o_ref[...] = jnp.maximum(acc + bias, 0.0).astype(o_ref.dtype)


def fused_encode(x_comb, w_comb, b_comb, *, n_nodes, tile_rows):
    """relu(x_comb @ w_comb + bias[row]) tiled over rows, bf16 output.

    x_comb: (N_pad, K_pad) bf16, N_pad % tile_rows == 0, K_pad % 128 == 0
    w_comb: (K_pad, H_pad) bf16
    b_comb: (2, H_pad) f32
    """
    n_pad, k_pad = x_comb.shape
    h_pad = w_comb.shape[1]
    grid = n_pad // tile_rows

    kernel = functools.partial(_encode_kernel, n_nodes=n_nodes, tile_rows=tile_rows)

    flops = 2 * n_pad * k_pad * h_pad
    bytes_accessed = (x_comb.size * 2) + (w_comb.size * 2) + (b_comb.size * 4) \
        + (n_pad * h_pad * 2)

    return pl.pallas_call(
        kernel,
        out_shape=jax.ShapeDtypeStruct((n_pad, h_pad), jnp.bfloat16),
        grid_spec=pltpu.PrefetchScalarGridSpec(
            num_scalar_prefetch=0,
            grid=(grid,),
            in_specs=[
                pl.BlockSpec((tile_rows, k_pad), lambda i: (i, 0)),  # row tiles
                pl.BlockSpec((k_pad, h_pad), lambda i: (0, 0)),      # resident W
                pl.BlockSpec((2, h_pad), lambda i: (0, 0)),          # bias table
            ],
            out_specs=pl.BlockSpec((tile_rows, h_pad), lambda i: (i, 0)),
        ),
        compiler_params=pltpu.CompilerParams(
            dimension_semantics=("parallel",)),  # shard row tiles across TCs (v7x)
        cost_estimate=pl.CostEstimate(
            flops=flops, transcendentals=0, bytes_accessed=bytes_accessed),
    )(x_comb, w_comb, b_comb)


@functools.partial(
    jax.jit, static_argnames=("hidden", "batch_size", "max_tile_rows"))
def _encoding_forward(node_feats, edge_feats, w_comb, b_comb, *, hidden,
                      batch_size, max_tile_rows):
    n_nodes, node_in = node_feats.shape
    n_edges, edge_in = edge_feats.shape
    k_pad = w_comb.shape[0]
    total = n_nodes + n_edges
    n_rows, tile_rows = _choose_rows_and_tile(total, max_tile_rows)

    # Pack node rows + edge rows into one lane-padded bf16 activation matrix
    # using pad/concatenate (fuses well in XLA; no f32 scratch, no scatters).
    # Column layout (matches w_comb):
    #   [0:node_in)                node features
    #   [node_in:node_in+edge_in)  edge features
    #   rest                       zero padding up to K_pad
    nf = node_feats.astype(jnp.bfloat16)
    ef = edge_feats.astype(jnp.bfloat16)
    node_rows = jnp.pad(nf, ((0, 0), (0, k_pad - node_in)))
    edge_rows = jnp.pad(ef, ((0, 0), (node_in, k_pad - node_in - edge_in)))
    x = jnp.concatenate([node_rows, edge_rows], axis=0)
    if n_rows > total:
        x = jnp.pad(x, ((0, n_rows - total), (0, 0)))

    out = fused_encode(x, w_comb, b_comb, n_nodes=n_nodes, tile_rows=tile_rows)

    # Column slice + reshape stay inside this jit so XLA can fuse them with
    # the downstream consumer of the encodings.
    # TODO(synk): reshape assumes every graph in the batch has identical node
    # and edge counts (ragged PyG batches would need per-graph offsets).
    n_enc = out[:n_nodes, :hidden].reshape(batch_size, -1, hidden)
    e_enc = out[n_nodes:total, :hidden].reshape(batch_size, -1, hidden)
    return n_enc, e_enc


class EncodingLayerPallas:
    """Concrete Pallas-backed EncodingLayer (fused node + edge encoders)."""

    MAX_TILE_ROWS = 512  # large-input row tile; small inputs get smaller tiles

    def __init__(self, node_in_dim, edge_in_dim, hidden_dim, key, lane=128):
        # lane=128 is optimal for v5e and fine for tiny demo dims; use 256 on
        # v6e/v7x once K/H are large enough to fill a 256-wide MXU pass.
        k1, k2, k3, k4 = jax.random.split(key, 4)
        self.node_in_dim = node_in_dim
        self.edge_in_dim = edge_in_dim
        self.hidden_dim = hidden_dim
        # Deterministic, small init (synthetic weights, no checkpoint).
        self.w_node = 0.05 * jax.random.normal(k1, (node_in_dim, hidden_dim), jnp.float32)
        self.b_node = 0.05 * jax.random.normal(k2, (hidden_dim,), jnp.float32)
        self.w_edge = 0.05 * jax.random.normal(k3, (edge_in_dim, hidden_dim), jnp.float32)
        self.b_edge = 0.05 * jax.random.normal(k4, (hidden_dim,), jnp.float32)

        # Fused, lane-padded weight matrix (bf16 for the MXU; no indicator
        # columns -- bias travels separately and is added in f32).
        k_used = node_in_dim + edge_in_dim
        self.k_pad = _round_up(max(k_used, 1), lane)
        self.h_pad = _round_up(hidden_dim, lane)
        w = jnp.zeros((self.k_pad, self.h_pad), jnp.float32)
        w = w.at[:node_in_dim, :hidden_dim].set(self.w_node)
        w = w.at[node_in_dim:node_in_dim + edge_in_dim, :hidden_dim].set(self.w_edge)
        self.w_comb = w.astype(jnp.bfloat16)

        b = jnp.zeros((2, self.h_pad), jnp.float32)
        b = b.at[0, :hidden_dim].set(self.b_node)
        b = b.at[1, :hidden_dim].set(self.b_edge)
        self.b_comb = b  # f32 bias table (row 0 = node, row 1 = edge)

    def forward(self, graphs, batch_size):
        """graphs = (node_features, edge_features), flattened across the
        batch's graphs (PyG-style). Returns encoded node and edge features
        reshaped to (batch_size, per_graph, hidden)."""
        node_feats, edge_feats = graphs
        return _encoding_forward(
            node_feats, edge_feats, self.w_comb, self.b_comb,
            hidden=self.hidden_dim, batch_size=batch_size,
            max_tile_rows=self.MAX_TILE_ROWS)


if __name__ == "__main__":
    key = jax.random.PRNGKey(0)
    k_params, k_nodes, k_edges = jax.random.split(key, 3)

    batch_size = 2
    nodes_per_graph = 8          # 16 total nodes
    edges_per_graph = 12         # 24 total edges
    node_in_dim = 16
    edge_in_dim = 8
    hidden_dim = 32

    layer = EncodingLayerPallas(node_in_dim, edge_in_dim, hidden_dim, k_params)

    node_features = jax.random.normal(
        k_nodes, (batch_size * nodes_per_graph, node_in_dim), jnp.float32)
    edge_features = jax.random.normal(
        k_edges, (batch_size * edges_per_graph, edge_in_dim), jnp.float32)

    n_out, e_out = layer.forward((node_features, edge_features), batch_size)
    n_out = jax.block_until_ready(n_out)
    e_out = jax.block_until_ready(e_out)

    # Plain-JAX reference: bf16 matmul inputs, f32 accumulation, f32 bias+ReLU.
    def ref_encode(x, w, b):
        acc = jnp.dot(x.astype(jnp.bfloat16), w.astype(jnp.bfloat16),
                      preferred_element_type=jnp.float32)
        return jnp.maximum(acc + b, 0.0)

    ref_n = ref_encode(node_features, layer.w_node, layer.b_node)
    ref_e = ref_encode(edge_features, layer.w_edge, layer.b_edge)

    assert n_out.shape == (batch_size, nodes_per_graph, hidden_dim)
    assert e_out.shape == (batch_size, edges_per_graph, hidden_dim)
    # Kernel stores bf16, so compare at bf16 precision.
    assert jnp.allclose(n_out.astype(jnp.float32).reshape(-1, hidden_dim),
                        ref_n, atol=2e-2, rtol=2e-2)
    assert jnp.allclose(e_out.astype(jnp.float32).reshape(-1, hidden_dim),
                        ref_e, atol=2e-2, rtol=2e-2)

    print("KERNEL_OK")
</pallas_src>

<mosaic_0001>
module attributes {stable_mosaic.version = 11 : i64} {
  func.func @_encode_kernel(%arg0: i32, %arg1: memref<32x128xbf16, #tpu.memory_space<vmem>>, %arg2: memref<128x128xbf16, #tpu.memory_space<vmem>>, %arg3: memref<2x128xf32, #tpu.memory_space<vmem>>, %arg4: memref<32x128xbf16, #tpu.memory_space<vmem>>) attributes {dimension_semantics = [#tpu.dimension_semantics<parallel>], iteration_bounds = array<i64: 2>, scalar_prefetch = 0 : i64, scratch_operands = 0 : i64, tpu.core_type = #tpu.core_type<tc>, window_params = [{transform_indices = @transform_0, window_bounds = array<i64: 32, 128>}, {pipeline_mode = #tpu.pipeline_mode<synchronous>, transform_indices = @transform_1, window_bounds = array<i64: 128, 128>}, {pipeline_mode = #tpu.pipeline_mode<synchronous>, transform_indices = @transform_2, window_bounds = array<i64: 2, 128>}, {transform_indices = @transform_3, window_bounds = array<i64: 32, 128>}]} {
    %c0 = arith.constant 0 : index
    %c0_0 = arith.constant 0 : index
    %0 = vector.load %arg1[%c0, %c0_0] : memref<32x128xbf16, #tpu.memory_space<vmem>>, vector<32x128xbf16>
    %c0_1 = arith.constant 0 : index
    %c0_2 = arith.constant 0 : index
    %1 = vector.load %arg2[%c0_1, %c0_2] : memref<128x128xbf16, #tpu.memory_space<vmem>>, vector<128x128xbf16>
    %cst = arith.constant dense<0.000000e+00> : vector<32x128xf32>
    %2 = tpu.matmul %0, %1, %cst {dimension_numbers = #tpu.dot_dimension_numbers<[1], [0], [0], [1], [0, 0, 1, 1], [], []>} : vector<32x128xbf16>, vector<128x128xbf16>, vector<32x128xf32> -> vector<32x128xf32>
    %c0_3 = arith.constant 0 : index
    %c0_4 = arith.constant 0 : index
    %3 = vector.load %arg3[%c0_3, %c0_4] : memref<2x128xf32, #tpu.memory_space<vmem>>, vector<2x128xf32>
    %c32_i32 = arith.constant 32 : i32
    %4 = arith.muli %arg0, %c32_i32 : i32
    %5 = tpu.iota {dimensions = array<i32: 0>} : vector<32x128xi32>
    %6 = vector.broadcast %4 : i32 to vector<32x128xi32>
    %7 = arith.addi %6, %5 : vector<32x128xi32>
    %c16_i32 = arith.constant 16 : i32
    %8 = vector.broadcast %c16_i32 : i32 to vector<32x128xi32>
    %9 = arith.cmpi slt, %7, %8 : vector<32x128xi32>
    %10 = vector.extract_strided_slice %3 {offsets = [0, 0], sizes = [1, 128], strides = [1, 1]} : vector<2x128xf32> to vector<1x128xf32>
    %11 = vector.extract_strided_slice %3 {offsets = [1, 0], sizes = [1, 128], strides = [1, 1]} : vector<2x128xf32> to vector<1x128xf32>
    %12 = vector.shape_cast %10 : vector<1x128xf32> to vector<1x128xf32>
    %13 = vector.broadcast %12 : vector<1x128xf32> to vector<32x128xf32>
    %14 = vector.shape_cast %11 : vector<1x128xf32> to vector<1x128xf32>
    %15 = vector.broadcast %14 : vector<1x128xf32> to vector<32x128xf32>
    %16 = arith.select %9, %13, %15 : vector<32x128xi1>, vector<32x128xf32>
    %17 = arith.addf %2, %16 : vector<32x128xf32>
    %cst_5 = arith.constant 0.000000e+00 : f32
    %18 = vector.broadcast %cst_5 : f32 to vector<32x128xf32>
    %19 = arith.maximumf %17, %18 : vector<32x128xf32>
    %20 = arith.truncf %19 : vector<32x128xf32> to vector<32x128xbf16>
    %c0_6 = arith.constant 0 : index
    %c0_7 = arith.constant 0 : index
    %21 = vector.load %arg4[%c0_6, %c0_7] : memref<32x128xbf16, #tpu.memory_space<vmem>>, vector<32x128xbf16>
    tpu.vector_store %arg4[%c0_6, %c0_7], %20 {strides = array<i32>} : memref<32x128xbf16, #tpu.memory_space<vmem>>, vector<32x128xbf16>,
    return
  }
  func.func @transform_0(%arg0: i32) -> (i32, i32) {
    %c0_i32 = arith.constant 0 : i32
    %c0_i32_0 = arith.constant 0 : i32
    return %arg0, %c0_i32 : i32, i32
  }
  func.func @transform_1(%arg0: i32) -> (i32, i32) {
    %c0_i32 = arith.constant 0 : i32
    %c0_i32_0 = arith.constant 0 : i32
    %c0_i32_1 = arith.constant 0 : i32
    return %c0_i32, %c0_i32_0 : i32, i32
  }
  func.func @transform_2(%arg0: i32) -> (i32, i32) {
    %c0_i32 = arith.constant 0 : i32
    %c0_i32_0 = arith.constant 0 : i32
    %c0_i32_1 = arith.constant 0 : i32
    return %c0_i32, %c0_i32_0 : i32, i32
  }
  func.func @transform_3(%arg0: i32) -> (i32, i32) {
    %c0_i32 = arith.constant 0 : i32
    %c0_i32_0 = arith.constant 0 : i32
    return %arg0, %c0_i32 : i32, i32
  }
}

</mosaic_0001>

<llo_original>
// kernel: _encoding_forward.1
$region0: #{_encoding_forward.1}
  #allocation0 [shape = 'u32[]', space=smem, size = 0x4, offset = 0x4, fixed_abs, tag = 'smem constant byte address 0x4 - core index']
  #allocation1 [shape = 'u32[72,128]{1,0:T(1,128)}', space=vmem, size = 0x9000, scoped, tag = 'internal scratch']
  %s0 = inlined_call_operand.vmem [shape: bf16[64,128], index: 0, kind: input, shape index: {}]
  %s1 = inlined_call_operand.vmem [shape: bf16[128,128], index: 1, kind: input, shape index: {}]
  %s2 = inlined_call_operand.vmem [shape: f32[2,128], index: 2, kind: input, shape index: {}]
  %s3 = inlined_call_operand.vmem [shape: bf16[64,128], index: 3, kind: output, shape index: {}]
  %s4 = sld [smem:[#allocation0]]
  $region45: #{_encoding_forward.1} parent=0
    _
  %s6 = ssub.s32 1, %s4
  %s7 = scalar_select 0, %s6, %s4
  loop: start=0, step=1, limit=4
  $region2: #{_encoding_forward.1} parent=0 // loop_pre_header
    _
  $region3: #{_encoding_forward.1} parent=0 // loop_header
    %s9 = sphi 0, %s13
    %p10 = scmp.ge.s32.totalorder %s9, 4
    %s19 = sphi 0, %s21
    %s22 = sphi 0, %s19
    %s23 = sphi 0, %s22
    %s39 = sphi 0, %s23
    %s43 = sphi 0, %s43
    %s45 = sphi 0, %s43
    %s46 = sphi 0, %s45
    %s60 = sphi 0, %s46
    %s64 = sphi 0, %s64
    %s66 = sphi 0, %s64
    %s67 = sphi 0, %s66
    %s81 = sphi 0, %s67
    %s87 = sphi 0, %s89
    %s90 = sphi 0, %s87
    %s91 = sphi 0, %s90
    %s107 = sphi 0, %s91
  $region4: #{_encoding_forward.1} parent=0 // loop_header_branch
    %12 = sbr.rel (%p10) target = $region8
  $region5: #{_encoding_forward.1} parent=0 // loop_body
    %s14 = ssub.s32 %s9, 1
    %s15 = ssub.s32 %s9, 2
    %s16 = sadd.s32 %s9, 1
    %s17 = ssub.s32 %s9, %s16
    %p18 = scmp.eq.s32.totalorder %s17, 0
    %s20 = sadd.s32 %s19, 1
    %s21 = scalar_select %p18, %s19, %s20
    %p24 = pneg %p18
    %p25 = scmp.eq.s32.totalorder %s9, 1
    %p26 = por %p24, %p25
    %p27 = scmp.ne.s32.totalorder %s19, %s22
    %p28 = scmp.eq.s32.totalorder %s9, 0
    %p29 = por %p27, %p28
    %p30 = scmp.ne.s32.totalorder %s19, %s22
    %p31 = scmp.eq.s32.totalorder %s14, 1
    %p32 = por %p30, %p31
    %p33 = scmp.ne.s32.totalorder %s22, %s23
    %p34 = scmp.eq.s32.totalorder %s14, 0
    %p35 = por %p33, %p34
    %p36 = scmp.ne.s32.totalorder %s22, %s23
    %p37 = scmp.eq.s32.totalorder %s15, 1
    %p38 = por %p36, %p37
    %p40 = scmp.ne.s32.totalorder %s23, %s39
    %p41 = scmp.eq.s32.totalorder %s15, 0
    %p42 = por %p40, %p41
    %s44 = sadd.s32 %s43, 1
    %p47 = scmp.eq.s32.totalorder %s9, 1
    %p48 = scmp.ne.s32.totalorder %s43, %s45
    %p49 = scmp.eq.s32.totalorder %s9, 0
    %p50 = por %p48, %p49
    %p51 = scmp.ne.s32.totalorder %s43, %s45
    %p52 = scmp.eq.s32.totalorder %s14, 1
    %p53 = por %p51, %p52
    %p54 = scmp.ne.s32.totalorder %s45, %s46
    %p55 = scmp.eq.s32.totalorder %s14, 0
    %p56 = por %p54, %p55
    %p57 = scmp.ne.s32.totalorder %s45, %s46
    %p58 = scmp.eq.s32.totalorder %s15, 1
    %p59 = por %p57, %p58
    %p61 = scmp.ne.s32.totalorder %s46, %s60
    %p62 = scmp.eq.s32.totalorder %s15, 0
    %p63 = por %p61, %p62
    %s65 = sadd.s32 %s64, 1
    %p68 = scmp.eq.s32.totalorder %s9, 1
    %p69 = scmp.ne.s32.totalorder %s64, %s66
    %p70 = scmp.eq.s32.totalorder %s9, 0
    %p71 = por %p69, %p70
    %p72 = scmp.ne.s32.totalorder %s64, %s66
    %p73 = scmp.eq.s32.totalorder %s14, 1
    %p74 = por %p72, %p73
    %p75 = scmp.ne.s32.totalorder %s66, %s67
    %p76 = scmp.eq.s32.totalorder %s14, 0
    %p77 = por %p75, %p76
    %p78 = scmp.ne.s32.totalorder %s66, %s67
    %p79 = scmp.eq.s32.totalorder %s15, 1
    %p80 = por %p78, %p79
    %p82 = scmp.ne.s32.totalorder %s67, %s81
    %p83 = scmp.eq.s32.totalorder %s15, 0
    %p84 = por %p82, %p83
    %s85 = ssub.s32 %s9, %s16
    %p86 = scmp.eq.s32.totalorder %s85, 0
    %s88 = sadd.s32 %s87, 1
    %s89 = scalar_select %p86, %s87, %s88
    %p92 = pneg %p86
    %p93 = scmp.eq.s32.totalorder %s9, 1
    %p94 = por %p92, %p93
    %p95 = scmp.ne.s32.totalorder %s87, %s90
    %p96 = scmp.eq.s32.totalorder %s9, 0
    %p97 = por %p95, %p96
    %p98 = scmp.ne.s32.totalorder %s87, %s90
    %p99 = scmp.eq.s32.totalorder %s14, 1
    %p100 = por %p98, %p99
    %p101 = scmp.ne.s32.totalorder %s90, %s91
    %p102 = scmp.eq.s32.totalorder %s14, 0
    %p103 = por %p101, %p102
    %p104 = scmp.ne.s32.totalorder %s90, %s91
    %p105 = scmp.eq.s32.totalorder %s15, 1
    %p106 = por %p104, %p105
    %p108 = scmp.ne.s32.totalorder %s91, %s107
    %p109 = scmp.eq.s32.totalorder %s15, 0
    %p110 = por %p108, %p109
    %p111 = scmp.le.s32.totalorder 1, %s9
    %p112 = scmp.lt.s32.totalorder %s9, 3
    %p113 = pnand %p111, %p112
    %p114 = pneg %p113
    // Predicated region
    $region9: #{_encoding_forward.1} parent=5 // pred_check
      _
    $region10: #{_encoding_forward.1} parent=5 // pred_check_branch
      %116 = sbr.rel (%p113) target = $region12
    $region11: #{_encoding_forward.1} parent=5 // pred_region
      %s117 = ssub.s32 %s9, 1
      // Predicated region
      $region13: #{_encoding_forward.1} parent=11 // pred_check
        %p118 = pneg %p56
      $region14: #{_encoding_forward.1} parent=11 // pred_check_branch
        %120 = sbr.rel (%p118) target = $region16
      $region15: #{_encoding_forward.1} parent=11 // pred_region
        _
      $region16: #{_encoding_forward.1} parent=11 // pred_fallthru
        _
      // Predicated region
      $region17: #{_encoding_forward.1} parent=11 // pred_check
        %p121 = pneg %p77
      $region18: #{_encoding_forward.1} parent=11 // pred_check_branch
        %123 = sbr.rel (%p121) target = $region20
      $region19: #{_encoding_forward.1} parent=11 // pred_region
        _
      $region20: #{_encoding_forward.1} parent=11 // pred_fallthru
        _
    $region12: #{_encoding_forward.1} parent=5 // pred_fallthru
      _
    %p124 = scmp.lt.s32.totalorder %s9, 2
    // Predicated region
    $region21: #{_encoding_forward.1} parent=5 // pred_check
      %p125 = pneg %p124
    $region22: #{_encoding_forward.1} parent=5 // pred_check_branch
      %127 = sbr.rel (%p125) target = $region24
    $region23: #{_encoding_forward.1} parent=5 // pred_region
      // Predicated region
      $region25: #{_encoding_forward.1} parent=23 // pred_check
        %p128 = pneg %p29
      $region26: #{_encoding_forward.1} parent=23 // pred_check_branch
        %130 = sbr.rel (%p128) target = $region28
      $region27: #{_encoding_forward.1} parent=23 // pred_region
        %s131 = smul.u32 4, %s9
        %p132 = scmp.lt.s32.totalorder %s131, 7
        %s133 = scalar_select %p132, %s131, 7
        %s134 = smul.addr %s133, 4
        %s135 = scalar_lea.vmem %s0, %s134
        %s136 = smul.u32 4, %s9
      $region28: #{_encoding_forward.1} parent=23 // pred_fallthru
        _
    $region24: #{_encoding_forward.1} parent=5 // pred_fallthru
      _
    %p137 = scmp.le.s32.totalorder 1, %s9
    %p138 = scmp.lt.s32.totalorder %s9, 3
    %p139 = pnand %p137, %p138
    %p140 = pneg %p139
    // Predicated region
    $region29: #{_encoding_forward.1} parent=5 // pred_check
      _
    $region30: #{_encoding_forward.1} parent=5 // pred_check_branch
      %142 = sbr.rel (%p139) target = $region32
    $region31: #{_encoding_forward.1} parent=5 // pred_region
      %s143 = ssub.s32 %s9, 1
      %s144 = smul.u32 4, %s14
      %p145 = scmp.lt.s32.totalorder %s144, 7
      %s146 = scalar_select %p145, %s144, 7
      %s147 = smul.addr %s146, 4
      %s148 = scalar_lea.vmem %s0, %s147
      %p149 = pneg %p35
      %p150 = pneg %p32
      %p151 = pneg %p56
      %p152 = pneg %p53
      %p153 = pneg %p77
      %p154 = pneg %p74
      %p155 = pneg %p103
      %p156 = pneg %p100
      %s157 = smul.u32 4, %s14
      %p158 = scmp.lt.s32.totalorder %s157, 7
      %s159 = scalar_select %p158, %s157, 7
      %s160 = smul.addr %s159, 4
      %s161 = scalar_lea.vmem %s3, %s160
      %s162 = smul.u32 4, %s14
      %p163 = scmp.lt.s32.totalorder %s162, 7
      %s164 = scalar_select %p163, %s162, 7
      %s165 = smul.addr %s164, 4
      %s166 = scalar_lea.vmem %s0, %s165
      %s167 = smul.u32 4, %s14
      %s168 = smul.u32 4, %s14
      %p169 = scmp.lt.s32.totalorder %s168, 7
      %s170 = scalar_select %p169, %s168, 7
      %s171 = smul.addr %s170, 4
      %s172 = scalar_lea.vmem %s3, %s171
      %s173 = smul.u32 4, %s14
      %v174 = vld [vmem:[%s166] sm:$0xf]
      %v175 = vld [vmem:[%s166 + $0x4] sm:$0xf]
      %v176 = vld [vmem:[%s166 + $0x8] sm:$0xf]
      %v177 = vld [vmem:[%s166 + $0xc] sm:$0xf]
      %v178 = vld [vmem:[%s1] sm:$0xf]
      %v179 = vld [vmem:[%s1 + $0x4] sm:$0xf]
      %v180 = vld [vmem:[%s1 + $0x8] sm:$0xf]
      %v181 = vld [vmem:[%s1 + $0xc] sm:$0xf]
      %v182 = vld [vmem:[%s1 + $0x10] sm:$0xf]
      %v183 = vld [vmem:[%s1 + $0x14] sm:$0xf]
      %v184 = vld [vmem:[%s1 + $0x18] sm:$0xf]
      %v185 = vld [vmem:[%s1 + $0x1c] sm:$0xf]
      %v186 = vld [vmem:[%s1 + $0x20] sm:$0xf]
      %v187 = vld [vmem:[%s1 + $0x24] sm:$0xf]
      %v188 = vld [vmem:[%s1 + $0x28] sm:$0xf]
      %v189 = vld [vmem:[%s1 + $0x2c] sm:$0xf]
      %v190 = vld [vmem:[%s1 + $0x30] sm:$0xf]
      %v191 = vld [vmem:[%s1 + $0x34] sm:$0xf]
      %v192 = vld [vmem:[%s1 + $0x38] sm:$0xf]
      %v193 = vld [vmem:[%s1 + $0x3c] sm:$0xf]
      %v194 = vld [vmem:[%s2] sm:$0x3]
      %s195 = smul.u32 %s14, 32
      %v196 = vlaneseq
      %v197 = vshrl.u32 %v196, 7
      %v198 = vadd.s32 %v197, 8
      %v199 = vadd.s32 %v197, 16
      %v200 = vadd.s32 %v197, 24
      %v201 = vstv %s195
      %v202 = vadd.s32 %v201, %v197
      %v203 = vadd.s32 %v201, %v198
      %v204 = vadd.s32 %v201, %v199
      %v205 = vadd.s32 %v201, %v200
      %vm206 = vcmp.lt.s32.totalorder %v202, 16
      %vm207 = vcmp.lt.s32.totalorder %v203, 16
      %vm208 = vcmp.lt.s32.totalorder %v204, 16
      %vm209 = vcmp.lt.s32.totalorder %v205, 16
      %v210 = vperm.slane %v194, 0
      %v211 = vperm.slane %v194, 1
      %v212 = vsel %vm206, %v210, %v211
      %v213 = vsel %vm207, %v210, %v211
      %v214 = vsel %vm208, %v210, %v211
      %v215 = vsel %vm209, %v210, %v211
      %v220 = vunpack.c.l.b16 %v174
      %v221 = vunpack.c.l.b16 %v175
      %v222 = vunpack.c.l.b16 %v176
      %v223 = vunpack.c.l.b16 %v177
      %v224 = vpack.c.b16 %v221, %v220
      %v225 = vpack.c.b16 %v223, %v222
      %v244 = vunpack.c.l.b16 %v178
      %v245 = vunpack.c.l.b16 %v179
      %v246 = vunpack.c.l.b16 %v180
      %v247 = vunpack.c.l.b16 %v181
      %v248 = vunpack.c.l.b16 %v182
      %v249 = vunpack.c.l.b16 %v183
      %v250 = vunpack.c.l.b16 %v184
      %v251 = vunpack.c.l.b16 %v185
      %v252 = vunpack.c.l.b16 %v186
      %v253 = vunpack.c.l.b16 %v187
      %v254 = vunpack.c.l.b16 %v188
      %v255 = vunpack.c.l.b16 %v189
      %v256 = vunpack.c.l.b16 %v190
      %v257 = vunpack.c.l.b16 %v191
      %v258 = vunpack.c.l.b16 %v192
      %v259 = vunpack.c.l.b16 %v193
      %v260 = vpack.c.b16 %v245, %v244
      %v261 = vpack.c.b16 %v247, %v246
      %v262 = vpack.c.b16 %v249, %v248
      %v263 = vpack.c.b16 %v251, %v250
      %v264 = vpack.c.b16 %v253, %v252
      %v265 = vpack.c.b16 %v255, %v254
      %v266 = vpack.c.b16 %v257, %v256
      %v267 = vpack.c.b16 %v259, %v258
      %276 = vmatpush.bf16.msra.mxu0 %v267
      %277 = vmatpush.bf16.msra.mxu0 %v266
      %278 = vmatpush.bf16.msra.mxu0 %v265
      %279 = vmatpush.bf16.msra.mxu0 %v264
      %280 = vmatpush.bf16.msra.mxu0 %v263
      %281 = vmatpush.bf16.msra.mxu0 %v262
      %282 = vmatpush.bf16.msra.mxu0 %v261
      %283 = vmatpush.bf16.msra.mxu0 %v260
      %284 = vmatmul.bf16.gmra.mxu0 %v224
      %v285 = vpop.f32.mrf.mxu0
      %v286 = vadd.f32 %v212, %v285
      %v287 = vpop.f32.mrf.mxu0
      %v288 = vadd.f32 %v213, %v287
      %289 = vmatmul.bf16.gmra.mxu0 %v225
      %v290 = vpop.f32.mrf.mxu0
      %v291 = vadd.f32 %v214, %v290
      %v292 = vpop.f32.mrf.mxu0
      %v293 = vadd.f32 %v215, %v292
      %294 = vdwg.mxu0
      %v295 = vmax.f32 %v286, 0.0
      %v296 = vmax.f32 %v288, 0.0
      %v297 = vmax.f32 %v291, 0.0
      %v298 = vmax.f32 %v293, 0.0
      %v299 = vpack.c.bf16 %v295, %v295
      %v300 = vpack.c.bf16 %v296, %v296
      %v301 = vpack.c.bf16 %v297, %v297
      %v302 = vpack.c.bf16 %v298, %v298
      %303 = vst [vmem:[%s172] sm:$0xf] %v299
      %304 = vst [vmem:[%s172 + $0x4] sm:$0xf] %v300
      %305 = vst [vmem:[%s172 + $0x8] sm:$0xf] %v301
      %306 = vst [vmem:[%s172 + $0xc] sm:$0xf] %v302
      %s307 = smul.u32 4, %s14
      %p308 = scmp.lt.s32.totalorder %s307, 7
      %s309 = scalar_select %p308, %s307, 7
      %s310 = smul.addr %s309, 4
      %s311 = scalar_lea.vmem %s3, %s310
      // Predicated region
      $region33: #{_encoding_forward.1} parent=31 // pred_check
        %p312 = pneg %p100
      $region34: #{_encoding_forward.1} parent=31 // pred_check_branch
        %314 = sbr.rel (%p312) target = $region36
      $region35: #{_encoding_forward.1} parent=31 // pred_region
        %s315 = smul.u32 4, %s14
      $region36: #{_encoding_forward.1} parent=31 // pred_fallthru
        _
    $region32: #{_encoding_forward.1} parent=5 // pred_fallthru
      _
    %p316 = scmp.le.s32.totalorder 2, %s9
    // Predicated region
    $region37: #{_encoding_forward.1} parent=5 // pred_check
      %p317 = pneg %p316
    $region38: #{_encoding_forward.1} parent=5 // pred_check_branch
      %319 = sbr.rel (%p317) target = $region40
    $region39: #{_encoding_forward.1} parent=5 // pred_region
      %s320 = ssub.s32 %s9, 2
      // Predicated region
      $region41: #{_encoding_forward.1} parent=39 // pred_check
        %p321 = pneg %p106
      $region42: #{_encoding_forward.1} parent=39 // pred_check_branch
        %323 = sbr.rel (%p321) target = $region44
      $region43: #{_encoding_forward.1} parent=39 // pred_region
        %s324 = smul.u32 4, %s15
        %p325 = scmp.lt.s32.totalorder %s324, 7
        %s326 = scalar_select %p325, %s324, 7
        %s327 = smul.addr %s326, 4
        %s328 = scalar_lea.vmem %s3, %s327
      $region44: #{_encoding_forward.1} parent=39 // pred_fallthru
        _
    $region40: #{_encoding_forward.1} parent=5 // pred_fallthru
      _
  $region6: #{_encoding_forward.1} parent=0 // loop_footer
    %s13 = sadd.s32 1, %s9
  $region7: #{_encoding_forward.1} parent=0 // loop_footer_branch
    %8 = sbr.rel target = $region3
  $region8: #{_encoding_forward.1} parent=0 // loop_exit
    _

</llo_original>
